<compile_context>
chip_gen: v6e
topology: v6e:2x2x1
jax: 0.10.0
libtpu: 0.0.40
codegen_flags: <defaults>
</compile_context>

<pallas_src>
import functools

import jax
import jax.numpy as jnp
from jax import lax
from jax.experimental import pallas as pl
from jax.experimental.pallas import tpu as pltpu

NEG_BIG = -1e30
PAD_CLASSES = 128  # lane-dense width for the final output


# ----------------------------- Pallas kernel -------------------------------


def _gat_conv(x_bf16, w_ref, asrc_ref, adst_ref, bias_ref, adj_bias):
    """Single-head GATConv + fused tanh, operating on in-VMEM values."""
    # Linear transform on the MXU (bf16 operands, f32 accumulation).
    h = jnp.dot(x_bf16, w_ref[...], preferred_element_type=jnp.float32)      # [N, F] f32
    h_bf = h.astype(jnp.bfloat16)

    # Per-node attention scalars straight off the MXU (scores kept in f32):
    #   a_dst: [N, 1] column dot
    #   a_src: [1, N] via a q.k^T-style contraction -> NO [N,1]->[1,N] transpose.
    a_dst = jnp.dot(h, adst_ref[...], preferred_element_type=jnp.float32)    # [N, 1]
    a_src = lax.dot_general(asrc_ref[...], h,
                            (((1,), (1,)), ((), ())),
                            preferred_element_type=jnp.float32)              # [1, N]

    # e[i, j] = LeakyReLU(a_dst[i] + a_src[j], 0.2); mask is an additive bias.
    e = a_dst + a_src                                                        # [N, N]
    e = jnp.maximum(e, 0.2 * e)        # LeakyReLU, no compare/select
    e = e + adj_bias                   # -1e30 on non-edges, 0 on edges

    # Row softmax over incoming neighbors (self-loops guarantee denom > 0).
    e_max = jnp.max(e, axis=-1, keepdims=True)
    p = jnp.exp(e - e_max)
    attn = p * pl.reciprocal(jnp.sum(p, axis=-1, keepdims=True), approx=True)

    # Aggregate messages on the MXU (bf16 operands), add bias, fused tanh.
    out = jnp.dot(attn.astype(jnp.bfloat16), h_bf,
                  preferred_element_type=jnp.float32) + bias_ref[...]
    return jnp.tanh(out)


def fused_gat_kernel(x_ref, adjb_ref,
                     w1_ref, as1_ref, ad1_ref, b1_ref,
                     w2_ref, as2_ref, ad2_ref, b2_ref,
                     wo_ref, bo_ref, o_ref):
    adj_bias = adjb_ref[...]
    # conv1 -> tanh -> dropout(identity) -> conv2 -> tanh -> dropout(identity)
    # -> Linear -> softmax, all in VMEM, no HBM round-trips.
    # TODO(synk): dropout(p=0.5) is identity (inference mode); training-mode
    #             Bernoulli masking is not applied here.
    t1 = _gat_conv(x_ref[...].astype(jnp.bfloat16),
                   w1_ref, as1_ref, ad1_ref, b1_ref, adj_bias)               # [N, 256]
    t2 = _gat_conv(t1.astype(jnp.bfloat16),
                   w2_ref, as2_ref, ad2_ref, b2_ref, adj_bias)               # [N, 16]
    # Final Linear (class dim padded to 128 lanes) + softmax over classes.
    logits = jnp.dot(t2.astype(jnp.bfloat16), wo_ref[...],
                     preferred_element_type=jnp.float32) + bo_ref[...]       # [N, 128]
    m = jnp.max(logits, axis=-1, keepdims=True)
    p = jnp.exp(logits - m)            # padded classes have -1e30 bias -> exp == 0
    o_ref[...] = p / jnp.sum(p, axis=-1, keepdims=True)


# ------------------------------ JAX wrappers --------------------------------


def _full_spec(shape):
    # Single block = full array (satisfies the (8,128) rule via full-dim blocks).
    nd = len(shape)
    return pl.BlockSpec(shape, lambda i, _n=nd: (0,) * _n)


def gat_network_pallas(x, adj_bias, params):
    n = x.shape[0]
    args = (x, adj_bias,
            params["w1"], params["att_src1"], params["att_dst1"], params["bias1"],
            params["w2"], params["att_src2"], params["att_dst2"], params["bias2"],
            params["w_out_pad"], params["b_out_pad"])
    return pl.pallas_call(
        fused_gat_kernel,
        out_shape=jax.ShapeDtypeStruct((n, PAD_CLASSES), jnp.float32),
        grid=(1,),
        in_specs=[_full_spec(a.shape) for a in args],
        out_specs=_full_spec((n, PAD_CLASSES)),
        compiler_params=pltpu.CompilerParams(
            dimension_semantics=("arbitrary",),
            vmem_limit_bytes=16 * 1024 * 1024,  # generous vs. ~1 MiB of buffers
        ),
    )(*args)


@functools.partial(jax.jit, static_argnames=("num_classes",))
def gat_network_forward(x, adj_bias, params, *, num_classes):
    probs_pad = gat_network_pallas(x, adj_bias, params)
    return probs_pad[:, :num_classes]


# ------------------------------- setup / main --------------------------------


def glorot(key, shape):
    fan_in, fan_out = shape[0], shape[1]
    scale = jnp.sqrt(6.0 / (fan_in + fan_out))
    return jax.random.uniform(key, shape, jnp.float32, -scale, scale)


def make_params(key, num_features, hidden1, hidden2, num_classes):
    ks = jax.random.split(key, 8)
    w_out = glorot(ks[6], (hidden2, num_classes))
    b_out = jax.random.uniform(ks[7], (1, num_classes), jnp.float32, -0.1, 0.1)
    # Lane-dense padding of the output head; padded logits get a -1e30 bias so
    # they contribute exactly zero to the softmax.
    w_out_pad = jnp.zeros((hidden2, PAD_CLASSES), jnp.float32).at[:, :num_classes].set(w_out)
    b_out_pad = jnp.full((1, PAD_CLASSES), NEG_BIG, jnp.float32).at[:, :num_classes].set(b_out)
    return {
        # GATConv 1: num_features -> 256 (weights shipped as bf16 for the MXU).
        "w1": glorot(ks[0], (num_features, hidden1)).astype(jnp.bfloat16),
        "att_src1": glorot(ks[1], (1, hidden1)),   # row layout -> transposed-RHS MXU dot
        "att_dst1": glorot(ks[2], (hidden1, 1)),   # column layout -> MXU dot
        "bias1": jnp.zeros((1, hidden1), jnp.float32),
        # GATConv 2: 256 -> 16
        "w2": glorot(ks[3], (hidden1, hidden2)).astype(jnp.bfloat16),
        "att_src2": glorot(ks[4], (1, hidden2)),
        "att_dst2": glorot(ks[5], (hidden2, 1)),
        "bias2": jnp.zeros((1, hidden2), jnp.float32),
        # Output Linear: 16 -> num_classes (padded to 128 lanes)
        "w_out_pad": w_out_pad.astype(jnp.bfloat16),
        "b_out_pad": b_out_pad,
    }


def build_adj_bias(edge_index, num_nodes):
    """Additive attention mask: 0.0 where edge source->target (or self-loop), -1e30 else."""
    src, dst = edge_index
    adj = jnp.zeros((num_nodes, num_nodes), jnp.float32)
    adj = adj.at[dst, src].set(1.0)
    adj = adj + jnp.eye(num_nodes, dtype=jnp.float32)  # add_self_loops=True
    return jnp.where(adj > 0.0, 0.0, NEG_BIG).astype(jnp.float32)


if __name__ == "__main__":
    # Small synthetic "dataset": 16 nodes, 32 input features, 7 classes.
    NUM_NODES = 16
    NUM_FEATURES = 32
    HIDDEN1 = 256
    HIDDEN2 = 16
    NUM_CLASSES = 7

    key = jax.random.PRNGKey(0)
    k_x, k_p = jax.random.split(key)

    x = jax.random.normal(k_x, (NUM_NODES, NUM_FEATURES), jnp.float32)

    # Deterministic ring graph (bidirectional edges), PyG-style edge_index [2, E].
    src = jnp.arange(NUM_NODES, dtype=jnp.int32)
    dst = (src + 1) % NUM_NODES
    edge_index = jnp.stack(
        [jnp.concatenate([src, dst]), jnp.concatenate([dst, src])], axis=0
    )
    adj_bias = build_adj_bias(edge_index, NUM_NODES)

    params = make_params(k_p, NUM_FEATURES, HIDDEN1, HIDDEN2, NUM_CLASSES)

    out = gat_network_forward(x, adj_bias, params, num_classes=NUM_CLASSES)
    out = jax.block_until_ready(out)

    assert out.shape == (NUM_NODES, NUM_CLASSES)
    # Rows of the softmax output must sum to ~1.
    assert jnp.allclose(jnp.sum(out, axis=1), 1.0, atol=5e-3)
    assert bool(jnp.all(out >= 0.0))
    print("KERNEL_OK")
</pallas_src>

<mosaic_0001>
module attributes {stable_mosaic.version = 11 : i64} {
  func.func @fused_gat_kernel(%arg0: i32, %arg1: memref<16x32xf32, #tpu.memory_space<vmem>>, %arg2: memref<16x16xf32, #tpu.memory_space<vmem>>, %arg3: memref<32x256xbf16, #tpu.memory_space<vmem>>, %arg4: memref<1x256xf32, #tpu.memory_space<vmem>>, %arg5: memref<256x1xf32, #tpu.memory_space<vmem>>, %arg6: memref<1x256xf32, #tpu.memory_space<vmem>>, %arg7: memref<256x16xbf16, #tpu.memory_space<vmem>>, %arg8: memref<1x16xf32, #tpu.memory_space<vmem>>, %arg9: memref<16x1xf32, #tpu.memory_space<vmem>>, %arg10: memref<1x16xf32, #tpu.memory_space<vmem>>, %arg11: memref<16x128xbf16, #tpu.memory_space<vmem>>, %arg12: memref<1x128xf32, #tpu.memory_space<vmem>>, %arg13: memref<16x128xf32, #tpu.memory_space<vmem>>) attributes {dimension_semantics = [#tpu.dimension_semantics<arbitrary>], iteration_bounds = array<i64: 1>, scalar_prefetch = 0 : i64, scratch_operands = 0 : i64, tpu.core_type = #tpu.core_type<tc>, window_params = [{pipeline_mode = #tpu.pipeline_mode<synchronous>, transform_indices = @transform_0, window_bounds = array<i64: 16, 32>}, {pipeline_mode = #tpu.pipeline_mode<synchronous>, transform_indices = @transform_1, window_bounds = array<i64: 16, 16>}, {pipeline_mode = #tpu.pipeline_mode<synchronous>, transform_indices = @transform_2, window_bounds = array<i64: 32, 256>}, {pipeline_mode = #tpu.pipeline_mode<synchronous>, transform_indices = @transform_3, window_bounds = array<i64: 1, 256>}, {pipeline_mode = #tpu.pipeline_mode<synchronous>, transform_indices = @transform_4, window_bounds = array<i64: 256, 1>}, {pipeline_mode = #tpu.pipeline_mode<synchronous>, transform_indices = @transform_5, window_bounds = array<i64: 1, 256>}, {pipeline_mode = #tpu.pipeline_mode<synchronous>, transform_indices = @transform_6, window_bounds = array<i64: 256, 16>}, {pipeline_mode = #tpu.pipeline_mode<synchronous>, transform_indices = @transform_7, window_bounds = array<i64: 1, 16>}, {pipeline_mode = #tpu.pipeline_mode<synchronous>, transform_indices = @transform_8, window_bounds = array<i64: 16, 1>}, {pipeline_mode = #tpu.pipeline_mode<synchronous>, transform_indices = @transform_9, window_bounds = array<i64: 1, 16>}, {pipeline_mode = #tpu.pipeline_mode<synchronous>, transform_indices = @transform_10, window_bounds = array<i64: 16, 128>}, {pipeline_mode = #tpu.pipeline_mode<synchronous>, transform_indices = @transform_11, window_bounds = array<i64: 1, 128>}, {pipeline_mode = #tpu.pipeline_mode<synchronous>, transform_indices = @transform_12, window_bounds = array<i64: 16, 128>}]} {
    %c0 = arith.constant 0 : index
    %c0_0 = arith.constant 0 : index
    %0 = vector.load %arg2[%c0, %c0_0] : memref<16x16xf32, #tpu.memory_space<vmem>>, vector<16x16xf32>
    %c0_1 = arith.constant 0 : index
    %c0_2 = arith.constant 0 : index
    %1 = vector.load %arg1[%c0_1, %c0_2] : memref<16x32xf32, #tpu.memory_space<vmem>>, vector<16x32xf32>
    %2 = arith.truncf %1 : vector<16x32xf32> to vector<16x32xbf16>
    %c0_3 = arith.constant 0 : index
    %c0_4 = arith.constant 0 : index
    %3 = vector.load %arg3[%c0_3, %c0_4] : memref<32x256xbf16, #tpu.memory_space<vmem>>, vector<32x256xbf16>
    %cst = arith.constant dense<0.000000e+00> : vector<16x256xf32>
    %4 = tpu.matmul %2, %3, %cst {dimension_numbers = #tpu.dot_dimension_numbers<[1], [0], [0], [1], [0, 0, 1, 1], [], []>} : vector<16x32xbf16>, vector<32x256xbf16>, vector<16x256xf32> -> vector<16x256xf32>
    %5 = arith.truncf %4 : vector<16x256xf32> to vector<16x256xbf16>
    %c0_5 = arith.constant 0 : index
    %c0_6 = arith.constant 0 : index
    %6 = vector.load %arg5[%c0_5, %c0_6] : memref<256x1xf32, #tpu.memory_space<vmem>>, vector<256x1xf32>
    %cst_7 = arith.constant dense<0.000000e+00> : vector<16x1xf32>
    %7 = tpu.matmul %4, %6, %cst_7 {dimension_numbers = #tpu.dot_dimension_numbers<[1], [0], [0], [1], [0, 0, 1, 1], [], []>} : vector<16x256xf32>, vector<256x1xf32>, vector<16x1xf32> -> vector<16x1xf32>
    %c0_8 = arith.constant 0 : index
    %c0_9 = arith.constant 0 : index
    %8 = vector.load %arg4[%c0_8, %c0_9] : memref<1x256xf32, #tpu.memory_space<vmem>>, vector<1x256xf32>
    %cst_10 = arith.constant dense<0.000000e+00> : vector<1x16xf32>
    %9 = tpu.matmul %8, %4, %cst_10 {dimension_numbers = #tpu.dot_dimension_numbers<[1], [1], [0], [0], [0, 0, 1, 0], [], []>} : vector<1x256xf32>, vector<16x256xf32>, vector<1x16xf32> -> vector<1x16xf32>
    %10 = vector.broadcast %7 : vector<16x1xf32> to vector<16x16xf32>
    %11 = vector.broadcast %9 : vector<1x16xf32> to vector<16x16xf32>
    %12 = arith.addf %10, %11 : vector<16x16xf32>
    %cst_11 = arith.constant 2.000000e-01 : f32
    %13 = vector.broadcast %cst_11 : f32 to vector<16x16xf32>
    %14 = arith.mulf %13, %12 : vector<16x16xf32>
    %15 = arith.maximumf %12, %14 : vector<16x16xf32>
    %16 = arith.addf %15, %0 : vector<16x16xf32>
    %cst_12 = arith.constant dense<0xFF800000> : vector<16xf32>
    %17 = vector.multi_reduction <maximumf>, %16, %cst_12 [1] : vector<16x16xf32> to vector<16xf32>
    %18 = vector.shape_cast %17 : vector<16xf32> to vector<16x1xf32>
    %19 = vector.broadcast %18 : vector<16x1xf32> to vector<16x16xf32>
    %20 = arith.subf %16, %19 : vector<16x16xf32>
    %21 = math.exp %20 : vector<16x16xf32>
    %cst_13 = arith.constant dense<0.000000e+00> : vector<16xf32>
    %22 = vector.multi_reduction <add>, %21, %cst_13 [1] : vector<16x16xf32> to vector<16xf32>
    %23 = vector.shape_cast %22 : vector<16xf32> to vector<16x1xf32>
    %24 = tpu.reciprocal %23 {approx = true} : vector<16x1xf32> -> vector<16x1xf32>
    %25 = vector.broadcast %24 : vector<16x1xf32> to vector<16x16xf32>
    %26 = arith.mulf %21, %25 : vector<16x16xf32>
    %27 = arith.truncf %26 : vector<16x16xf32> to vector<16x16xbf16>
    %cst_14 = arith.constant dense<0.000000e+00> : vector<16x256xf32>
    %28 = tpu.matmul %27, %5, %cst_14 {dimension_numbers = #tpu.dot_dimension_numbers<[1], [0], [0], [1], [0, 0, 1, 1], [], []>} : vector<16x16xbf16>, vector<16x256xbf16>, vector<16x256xf32> -> vector<16x256xf32>
    %c0_15 = arith.constant 0 : index
    %c0_16 = arith.constant 0 : index
    %29 = vector.load %arg6[%c0_15, %c0_16] : memref<1x256xf32, #tpu.memory_space<vmem>>, vector<1x256xf32>
    %30 = vector.broadcast %29 : vector<1x256xf32> to vector<16x256xf32>
    %31 = arith.addf %28, %30 : vector<16x256xf32>
    %32 = math.tanh %31 : vector<16x256xf32>
    %33 = arith.truncf %32 : vector<16x256xf32> to vector<16x256xbf16>
    %c0_17 = arith.constant 0 : index
    %c0_18 = arith.constant 0 : index
    %34 = vector.load %arg7[%c0_17, %c0_18] : memref<256x16xbf16, #tpu.memory_space<vmem>>, vector<256x16xbf16>
    %cst_19 = arith.constant dense<0.000000e+00> : vector<16x16xf32>
    %35 = tpu.matmul %33, %34, %cst_19 {dimension_numbers = #tpu.dot_dimension_numbers<[1], [0], [0], [1], [0, 0, 1, 1], [], []>} : vector<16x256xbf16>, vector<256x16xbf16>, vector<16x16xf32> -> vector<16x16xf32>
    %36 = arith.truncf %35 : vector<16x16xf32> to vector<16x16xbf16>
    %c0_20 = arith.constant 0 : index
    %c0_21 = arith.constant 0 : index
    %37 = vector.load %arg9[%c0_20, %c0_21] : memref<16x1xf32, #tpu.memory_space<vmem>>, vector<16x1xf32>
    %cst_22 = arith.constant dense<0.000000e+00> : vector<16x1xf32>
    %38 = tpu.matmul %35, %37, %cst_22 {dimension_numbers = #tpu.dot_dimension_numbers<[1], [0], [0], [1], [0, 0, 1, 1], [], []>} : vector<16x16xf32>, vector<16x1xf32>, vector<16x1xf32> -> vector<16x1xf32>
    %c0_23 = arith.constant 0 : index
    %c0_24 = arith.constant 0 : index
    %39 = vector.load %arg8[%c0_23, %c0_24] : memref<1x16xf32, #tpu.memory_space<vmem>>, vector<1x16xf32>
    %cst_25 = arith.constant dense<0.000000e+00> : vector<1x16xf32>
    %40 = tpu.matmul %39, %35, %cst_25 {dimension_numbers = #tpu.dot_dimension_numbers<[1], [1], [0], [0], [0, 0, 1, 0], [], []>} : vector<1x16xf32>, vector<16x16xf32>, vector<1x16xf32> -> vector<1x16xf32>
    %41 = vector.broadcast %38 : vector<16x1xf32> to vector<16x16xf32>
    %42 = vector.broadcast %40 : vector<1x16xf32> to vector<16x16xf32>
    %43 = arith.addf %41, %42 : vector<16x16xf32>
    %cst_26 = arith.constant 2.000000e-01 : f32
    %44 = vector.broadcast %cst_26 : f32 to vector<16x16xf32>
    %45 = arith.mulf %44, %43 : vector<16x16xf32>
    %46 = arith.maximumf %43, %45 : vector<16x16xf32>
    %47 = arith.addf %46, %0 : vector<16x16xf32>
    %cst_27 = arith.constant dense<0xFF800000> : vector<16xf32>
    %48 = vector.multi_reduction <maximumf>, %47, %cst_27 [1] : vector<16x16xf32> to vector<16xf32>
    %49 = vector.shape_cast %48 : vector<16xf32> to vector<16x1xf32>
    %50 = vector.broadcast %49 : vector<16x1xf32> to vector<16x16xf32>
    %51 = arith.subf %47, %50 : vector<16x16xf32>
    %52 = math.exp %51 : vector<16x16xf32>
    %cst_28 = arith.constant dense<0.000000e+00> : vector<16xf32>
    %53 = vector.multi_reduction <add>, %52, %cst_28 [1] : vector<16x16xf32> to vector<16xf32>
    %54 = vector.shape_cast %53 : vector<16xf32> to vector<16x1xf32>
    %55 = tpu.reciprocal %54 {approx = true} : vector<16x1xf32> -> vector<16x1xf32>
    %56 = vector.broadcast %55 : vector<16x1xf32> to vector<16x16xf32>
    %57 = arith.mulf %52, %56 : vector<16x16xf32>
    %58 = arith.truncf %57 : vector<16x16xf32> to vector<16x16xbf16>
    %cst_29 = arith.constant dense<0.000000e+00> : vector<16x16xf32>
    %59 = tpu.matmul %58, %36, %cst_29 {dimension_numbers = #tpu.dot_dimension_numbers<[1], [0], [0], [1], [0, 0, 1, 1], [], []>} : vector<16x16xbf16>, vector<16x16xbf16>, vector<16x16xf32> -> vector<16x16xf32>
    %c0_30 = arith.constant 0 : index
    %c0_31 = arith.constant 0 : index
    %60 = vector.load %arg10[%c0_30, %c0_31] : memref<1x16xf32, #tpu.memory_space<vmem>>, vector<1x16xf32>
    %61 = vector.broadcast %60 : vector<1x16xf32> to vector<16x16xf32>
    %62 = arith.addf %59, %61 : vector<16x16xf32>
    %63 = math.tanh %62 : vector<16x16xf32>
    %64 = arith.truncf %63 : vector<16x16xf32> to vector<16x16xbf16>
    %c0_32 = arith.constant 0 : index
    %c0_33 = arith.constant 0 : index
    %65 = vector.load %arg11[%c0_32, %c0_33] : memref<16x128xbf16, #tpu.memory_space<vmem>>, vector<16x128xbf16>
    %cst_34 = arith.constant dense<0.000000e+00> : vector<16x128xf32>
    %66 = tpu.matmul %64, %65, %cst_34 {dimension_numbers = #tpu.dot_dimension_numbers<[1], [0], [0], [1], [0, 0, 1, 1], [], []>} : vector<16x16xbf16>, vector<16x128xbf16>, vector<16x128xf32> -> vector<16x128xf32>
    %c0_35 = arith.constant 0 : index
    %c0_36 = arith.constant 0 : index
    %67 = vector.load %arg12[%c0_35, %c0_36] : memref<1x128xf32, #tpu.memory_space<vmem>>, vector<1x128xf32>
    %68 = vector.broadcast %67 : vector<1x128xf32> to vector<16x128xf32>
    %69 = arith.addf %66, %68 : vector<16x128xf32>
    %cst_37 = arith.constant dense<0xFF800000> : vector<16xf32>
    %70 = vector.multi_reduction <maximumf>, %69, %cst_37 [1] : vector<16x128xf32> to vector<16xf32>
    %71 = vector.shape_cast %70 : vector<16xf32> to vector<16x1xf32>
    %72 = vector.broadcast %71 : vector<16x1xf32> to vector<16x128xf32>
    %73 = arith.subf %69, %72 : vector<16x128xf32>
    %74 = math.exp %73 : vector<16x128xf32>
    %cst_38 = arith.constant dense<0.000000e+00> : vector<16xf32>
    %75 = vector.multi_reduction <add>, %74, %cst_38 [1] : vector<16x128xf32> to vector<16xf32>
    %76 = vector.shape_cast %75 : vector<16xf32> to vector<16x1xf32>
    %77 = vector.broadcast %76 : vector<16x1xf32> to vector<16x128xf32>
    %78 = arith.divf %74, %77 : vector<16x128xf32>
    %c0_39 = arith.constant 0 : index
    %c0_40 = arith.constant 0 : index
    %79 = vector.load %arg13[%c0_39, %c0_40] : memref<16x128xf32, #tpu.memory_space<vmem>>, vector<16x128xf32>
    tpu.vector_store %arg13[%c0_39, %c0_40], %78 {strides = array<i32>} : memref<16x128xf32, #tpu.memory_space<vmem>>, vector<16x128xf32>,
    return
  }
  func.func @transform_0(%arg0: i32) -> (i32, i32) {
    %c0_i32 = arith.constant 0 : i32
    %c0_i32_0 = arith.constant 0 : i32
    %c0_i32_1 = arith.constant 0 : i32
    return %c0_i32, %c0_i32_0 : i32, i32
  }
  func.func @transform_1(%arg0: i32) -> (i32, i32) {
    %c0_i32 = arith.constant 0 : i32
    %c0_i32_0 = arith.constant 0 : i32
    %c0_i32_1 = arith.constant 0 : i32
    return %c0_i32, %c0_i32_0 : i32, i32
  }
  func.func @transform_2(%arg0: i32) -> (i32, i32) {
    %c0_i32 = arith.constant 0 : i32
    %c0_i32_0 = arith.constant 0 : i32
    %c0_i32_1 = arith.constant 0 : i32
    return %c0_i32, %c0_i32_0 : i32, i32
  }
  func.func @transform_3(%arg0: i32) -> (i32, i32) {
    %c0_i32 = arith.constant 0 : i32
    %c0_i32_0 = arith.constant 0 : i32
    %c0_i32_1 = arith.constant 0 : i32
    return %c0_i32, %c0_i32_0 : i32, i32
  }
  func.func @transform_4(%arg0: i32) -> (i32, i32) {
    %c0_i32 = arith.constant 0 : i32
    %c0_i32_0 = arith.constant 0 : i32
    %c0_i32_1 = arith.constant 0 : i32
    return %c0_i32, %c0_i32_0 : i32, i32
  }
  func.func @transform_5(%arg0: i32) -> (i32, i32) {
    %c0_i32 = arith.constant 0 : i32
    %c0_i32_0 = arith.constant 0 : i32
    %c0_i32_1 = arith.constant 0 : i32
    return %c0_i32, %c0_i32_0 : i32, i32
  }
  func.func @transform_6(%arg0: i32) -> (i32, i32) {
    %c0_i32 = arith.constant 0 : i32
    %c0_i32_0 = arith.constant 0 : i32
    %c0_i32_1 = arith.constant 0 : i32
    return %c0_i32, %c0_i32_0 : i32, i32
  }
  func.func @transform_7(%arg0: i32) -> (i32, i32) {
    %c0_i32 = arith.constant 0 : i32
    %c0_i32_0 = arith.constant 0 : i32
    %c0_i32_1 = arith.constant 0 : i32
    return %c0_i32, %c0_i32_0 : i32, i32
  }
  func.func @transform_8(%arg0: i32) -> (i32, i32) {
    %c0_i32 = arith.constant 0 : i32
    %c0_i32_0 = arith.constant 0 : i32
    %c0_i32_1 = arith.constant 0 : i32
    return %c0_i32, %c0_i32_0 : i32, i32
  }
  func.func @transform_9(%arg0: i32) -> (i32, i32) {
    %c0_i32 = arith.constant 0 : i32
    %c0_i32_0 = arith.constant 0 : i32
    %c0_i32_1 = arith.constant 0 : i32
    return %c0_i32, %c0_i32_0 : i32, i32
  }
  func.func @transform_10(%arg0: i32) -> (i32, i32) {
    %c0_i32 = arith.constant 0 : i32
    %c0_i32_0 = arith.constant 0 : i32
    %c0_i32_1 = arith.constant 0 : i32
    return %c0_i32, %c0_i32_0 : i32, i32
  }
  func.func @transform_11(%arg0: i32) -> (i32, i32) {
    %c0_i32 = arith.constant 0 : i32
    %c0_i32_0 = arith.constant 0 : i32
    %c0_i32_1 = arith.constant 0 : i32
    return %c0_i32, %c0_i32_0 : i32, i32
  }
  func.func @transform_12(%arg0: i32) -> (i32, i32) {
    %c0_i32 = arith.constant 0 : i32
    %c0_i32_0 = arith.constant 0 : i32
    %c0_i32_1 = arith.constant 0 : i32
    return %c0_i32, %c0_i32_0 : i32, i32
  }
}

</mosaic_0001>

<llo_original>
// kernel: gat_network_forward.1
$region0: #{gat_network_forward.1}
  #allocation0 [shape = 'u32[]', space=smem, size = 0x4, offset = 0x4, fixed_abs, tag = 'smem constant byte address 0x4 - core index']
  #allocation1 [shape = 'u32[144,128]{1,0:T(1,128)}', space=vmem, size = 0x12000, scoped, tag = 'internal scratch']
  %s0 = inlined_call_operand.vmem [shape: f32[16,32], index: 0, kind: input, shape index: {}]
  %s1 = inlined_call_operand.vmem [shape: f32[16,16], index: 1, kind: input, shape index: {}]
  %s2 = inlined_call_operand.vmem [shape: bf16[32,256], index: 2, kind: input, shape index: {}]
  %s3 = inlined_call_operand.vmem [shape: f32[1,256], index: 3, kind: input, shape index: {}]
  %s4 = inlined_call_operand.vmem [shape: f32[256,1], index: 4, kind: input, shape index: {}]
  %s5 = inlined_call_operand.vmem [shape: f32[1,256], index: 5, kind: input, shape index: {}]
  %s6 = inlined_call_operand.vmem [shape: bf16[256,16], index: 6, kind: input, shape index: {}]
  %s7 = inlined_call_operand.vmem [shape: f32[1,16], index: 7, kind: input, shape index: {}]
  %s8 = inlined_call_operand.vmem [shape: f32[16,1], index: 8, kind: input, shape index: {}]
  %s9 = inlined_call_operand.vmem [shape: f32[1,16], index: 9, kind: input, shape index: {}]
  %s10 = inlined_call_operand.vmem [shape: bf16[16,128], index: 10, kind: input, shape index: {}]
  %s11 = inlined_call_operand.vmem [shape: f32[1,128], index: 11, kind: input, shape index: {}]
  %s12 = inlined_call_operand.vmem [shape: f32[16,128], index: 12, kind: output, shape index: {}]
  %s13 = sld [smem:[#allocation0]]
  $region58: #{gat_network_forward.1} parent=0
    _
  %s15 = ssub.s32 1, %s13
  %s16 = scalar_select 0, %s15, %s13
  // Predicated region
  $region2: #{gat_network_forward.1} parent=0 // pred_check
    _
  $region3: #{gat_network_forward.1} parent=0 // pred_check_branch
    %18 = sbr.rel (0) target = $region5
  $region4: #{gat_network_forward.1} parent=0 // pred_region
    _
  $region5: #{gat_network_forward.1} parent=0 // pred_fallthru
    _
  // Predicated region
  $region6: #{gat_network_forward.1} parent=0 // pred_check
    _
  $region7: #{gat_network_forward.1} parent=0 // pred_check_branch
    %20 = sbr.rel (0) target = $region9
  $region8: #{gat_network_forward.1} parent=0 // pred_region
    _
  $region9: #{gat_network_forward.1} parent=0 // pred_fallthru
    _
  // Predicated region
  $region10: #{gat_network_forward.1} parent=0 // pred_check
    _
  $region11: #{gat_network_forward.1} parent=0 // pred_check_branch
    %22 = sbr.rel (0) target = $region13
  $region12: #{gat_network_forward.1} parent=0 // pred_region
    _
  $region13: #{gat_network_forward.1} parent=0 // pred_fallthru
    _
  // Predicated region
  $region14: #{gat_network_forward.1} parent=0 // pred_check
    _
  $region15: #{gat_network_forward.1} parent=0 // pred_check_branch
    %24 = sbr.rel (0) target = $region17
  $region16: #{gat_network_forward.1} parent=0 // pred_region
    _
  $region17: #{gat_network_forward.1} parent=0 // pred_fallthru
    _
  // Predicated region
  $region18: #{gat_network_forward.1} parent=0 // pred_check
    _
  $region19: #{gat_network_forward.1} parent=0 // pred_check_branch
    %26 = sbr.rel (0) target = $region21
  $region20: #{gat_network_forward.1} parent=0 // pred_region
    _
  $region21: #{gat_network_forward.1} parent=0 // pred_fallthru
    _
  // Predicated region
  $region22: #{gat_network_forward.1} parent=0 // pred_check
    _
  $region23: #{gat_network_forward.1} parent=0 // pred_check_branch
    %28 = sbr.rel (0) target = $region25
  $region24: #{gat_network_forward.1} parent=0 // pred_region
    _
  $region25: #{gat_network_forward.1} parent=0 // pred_fallthru
    _
  // Predicated region
  $region26: #{gat_network_forward.1} parent=0 // pred_check
    _
  $region27: #{gat_network_forward.1} parent=0 // pred_check_branch
    %30 = sbr.rel (0) target = $region29
  $region28: #{gat_network_forward.1} parent=0 // pred_region
    _
  $region29: #{gat_network_forward.1} parent=0 // pred_fallthru
    _
  // Predicated region
  $region30: #{gat_network_forward.1} parent=0 // pred_check
    _
  $region31: #{gat_network_forward.1} parent=0 // pred_check_branch
    %32 = sbr.rel (0) target = $region33
  $region32: #{gat_network_forward.1} parent=0 // pred_region
    _
  $region33: #{gat_network_forward.1} parent=0 // pred_fallthru
    _
  // Predicated region
  $region34: #{gat_network_forward.1} parent=0 // pred_check
    _
  $region35: #{gat_network_forward.1} parent=0 // pred_check_branch
    %34 = sbr.rel (0) target = $region37
  $region36: #{gat_network_forward.1} parent=0 // pred_region
    _
  $region37: #{gat_network_forward.1} parent=0 // pred_fallthru
    _
  // Predicated region
  $region38: #{gat_network_forward.1} parent=0 // pred_check
    _
  $region39: #{gat_network_forward.1} parent=0 // pred_check_branch
    %36 = sbr.rel (0) target = $region41
  $region40: #{gat_network_forward.1} parent=0 // pred_region
    _
  $region41: #{gat_network_forward.1} parent=0 // pred_fallthru
    _
  // Predicated region
  $region42: #{gat_network_forward.1} parent=0 // pred_check
    _
  $region43: #{gat_network_forward.1} parent=0 // pred_check_branch
    %38 = sbr.rel (0) target = $region45
  $region44: #{gat_network_forward.1} parent=0 // pred_region
    _
  $region45: #{gat_network_forward.1} parent=0 // pred_fallthru
    _
  // Predicated region
  $region46: #{gat_network_forward.1} parent=0 // pred_check
    _
  $region47: #{gat_network_forward.1} parent=0 // pred_check_branch
    %40 = sbr.rel (0) target = $region49
  $region48: #{gat_network_forward.1} parent=0 // pred_region
    _
  $region49: #{gat_network_forward.1} parent=0 // pred_fallthru
    _
  %v42 = vld [vmem:[%s1] sm:$0xff]
  %v43 = vld [vmem:[%s1 + $0x8] sm:$0xff]
  %v44 = vld [vmem:[%s0] sm:$0xff]
  %v45 = vld [vmem:[%s0 + $0x8] sm:$0xff]
  %v46 = vpack.c.bf16 %v45, %v44
  %v47 = vld [vmem:[%s2] sm:$0xff]
  %v48 = vld [vmem:[%s2 + $0x8] sm:$0xff]
  %v49 = vld [vmem:[%s2 + $0x10] sm:$0xff]
  %v50 = vld [vmem:[%s2 + $0x18] sm:$0xff]
  %v55 = vunpack.c.l.b16 %v47
  %v56 = vunpack.c.h.b16 %v47
  %v57 = vunpack.c.l.b16 %v48
  %v58 = vunpack.c.h.b16 %v48
  %v59 = vunpack.c.l.b16 %v49
  %v60 = vunpack.c.h.b16 %v49
  %v61 = vunpack.c.l.b16 %v50
  %v62 = vunpack.c.h.b16 %v50
  %v63 = vpack.c.b16 %v57, %v55
  %v64 = vpack.c.b16 %v58, %v56
  %v65 = vpack.c.b16 %v61, %v59
  %v66 = vpack.c.b16 %v62, %v60
  %vm71 = vcmask 261120
  %v73 = vsel %vm71, %v46, 0
  %75 = vmatprep.subr.bf16.mxu0 0
  %76 = vmatpush1.bf16.msra.mxu0 0
  %77 = vmatprep.subr.bf16.mxu0 0
  %78 = vmatpush1.bf16.msra.mxu0 0
  %79 = vmatprep.subr.bf16.mxu0 0
  %80 = vmatpush1.bf16.msra.mxu0 0
  %81 = vmatprep.subr.bf16.mxu0 0
  %82 = vmatpush1.bf16.msra.mxu0 0
  %83 = vmatprep.subr.bf16.mxu0 0
  %84 = vmatpush1.bf16.msra.mxu0 0
  %85 = vmatprep.subr.bf16.mxu0 0
  %86 = vmatpush1.bf16.msra.mxu0 0
  %87 = vmatprep.subr.bf16.mxu0 %v66
  %88 = vmatpush1.bf16.msra.mxu0 %v65
  %89 = vmatprep.subr.bf16.mxu0 %v64
  %90 = vmatpush1.bf16.msra.mxu0 %v63
  %91 = vmatprep.subr.bf16.mxu0 0
  %92 = vmatpush2.bf16.msra.mxu0 0
  %93 = vmatprep.subr.bf16.mxu0 0
  %94 = vmatpush2.bf16.msra.mxu0 0
  %95 = vmatprep.subr.bf16.mxu0 0
  %96 = vmatpush2.bf16.msra.mxu0 0
  %97 = vmatprep.subr.bf16.mxu0 0
  %98 = vmatpush2.bf16.msra.mxu0 0
  %99 = vmatprep.subr.bf16.mxu0 0
  %100 = vmatpush2.bf16.msra.mxu0 0
  %101 = vmatprep.subr.bf16.mxu0 0
  %102 = vmatpush2.bf16.msra.mxu0 0
  %103 = vmatprep.subr.bf16.mxu0 0
  %104 = vmatpush2.bf16.msra.mxu0 0
  %105 = vmatprep.subr.bf16.mxu0 0
  %106 = vmatpush2.bf16.msra.mxu0 0
  %107 = vmatprep.mubr.bf16.mxu0 0
  %108 = vmatmul.mubr.bf16.gmra.mxu0 %v73
  %v109 = vpop.f32.mrf.mxu0
  %v110 = vadd.f32 0.0, %v109
  %v111 = vpop.f32.mrf.mxu0
  %v112 = vadd.f32 0.0, %v111
  %v113 = vpop.f32.mrf.mxu0
  %v114 = vadd.f32 0.0, %v113
  %v115 = vpop.f32.mrf.mxu0
  %v116 = vadd.f32 0.0, %v115
  %117 = vdwg.mxu0
  %v118 = vpack.c.bf16 %v114, %v110
  %v119 = vpack.c.bf16 %v116, %v112
  %v120 = vld [vmem:[%s4] sm:$0xff]
  %v121 = vld [vmem:[%s4 + $0x8] sm:$0xff]
  %v122 = vld [vmem:[%s4 + $0x10] sm:$0xff]
  %v123 = vld [vmem:[%s4 + $0x18] sm:$0xff]
  %v124 = vld [vmem:[%s4 + $0x20] sm:$0xff]
  %v125 = vld [vmem:[%s4 + $0x28] sm:$0xff]
  %v126 = vld [vmem:[%s4 + $0x30] sm:$0xff]
  %v127 = vld [vmem:[%s4 + $0x38] sm:$0xff]
  %v128 = vld [vmem:[%s4 + $0x40] sm:$0xff]
  %v129 = vld [vmem:[%s4 + $0x48] sm:$0xff]
  %v130 = vld [vmem:[%s4 + $0x50] sm:$0xff]
  %v131 = vld [vmem:[%s4 + $0x58] sm:$0xff]
  %v132 = vld [vmem:[%s4 + $0x60] sm:$0xff]
  %v133 = vld [vmem:[%s4 + $0x68] sm:$0xff]
  %v134 = vld [vmem:[%s4 + $0x70] sm:$0xff]
  %v135 = vld [vmem:[%s4 + $0x78] sm:$0xff]
  %v136 = vld [vmem:[%s4 + $0x80] sm:$0xff]
  %v137 = vld [vmem:[%s4 + $0x88] sm:$0xff]
  %v138 = vld [vmem:[%s4 + $0x90] sm:$0xff]
  %v139 = vld [vmem:[%s4 + $0x98] sm:$0xff]
  %v140 = vld [vmem:[%s4 + $0xa0] sm:$0xff]
  %v141 = vld [vmem:[%s4 + $0xa8] sm:$0xff]
  %v142 = vld [vmem:[%s4 + $0xb0] sm:$0xff]
  %v143 = vld [vmem:[%s4 + $0xb8] sm:$0xff]
  %v144 = vld [vmem:[%s4 + $0xc0] sm:$0xff]
  %v145 = vld [vmem:[%s4 + $0xc8] sm:$0xff]
  %v146 = vld [vmem:[%s4 + $0xd0] sm:$0xff]
  %v147 = vld [vmem:[%s4 + $0xd8] sm:$0xff]
  %v148 = vld [vmem:[%s4 + $0xe0] sm:$0xff]
  %v149 = vld [vmem:[%s4 + $0xe8] sm:$0xff]
  %v150 = vld [vmem:[%s4 + $0xf0] sm:$0xff]
  %v151 = vld [vmem:[%s4 + $0xf8] sm:$0xff]
  %152 = vmatprep.subr.mxu0 0.0
  %153 = vmatpush1.msra.mxu0 %v135
  %154 = vmatprep.subr.mxu0 0.0
  %155 = vmatpush1.msra.mxu0 %v134
  %156 = vmatprep.subr.mxu0 0.0
  %157 = vmatpush1.msra.mxu0 %v133
  %158 = vmatprep.subr.mxu0 0.0
  %159 = vmatpush1.msra.mxu0 %v132
  %160 = vmatprep.subr.mxu0 0.0
  %161 = vmatpush1.msra.mxu0 %v131
  %162 = vmatprep.subr.mxu0 0.0
  %163 = vmatpush1.msra.mxu0 %v130
  %164 = vmatprep.subr.mxu0 0.0
  %165 = vmatpush1.msra.mxu0 %v129
  %166 = vmatprep.subr.mxu0 0.0
  %167 = vmatpush1.msra.mxu0 %v128
  %168 = vmatprep.subr.mxu0 0.0
  %169 = vmatpush1.msra.mxu0 %v127
  %170 = vmatprep.subr.mxu0 0.0
  %171 = vmatpush1.msra.mxu0 %v126
  %172 = vmatprep.subr.mxu0 0.0
  %173 = vmatpush1.msra.mxu0 %v125
  %174 = vmatprep.subr.mxu0 0.0
  %175 = vmatpush1.msra.mxu0 %v124
  %176 = vmatprep.subr.mxu0 0.0
  %177 = vmatpush1.msra.mxu0 %v123
  %178 = vmatprep.subr.mxu0 0.0
  %179 = vmatpush1.msra.mxu0 %v122
  %180 = vmatprep.subr.mxu0 0.0
  %181 = vmatpush1.msra.mxu0 %v121
  %182 = vmatprep.subr.mxu0 0.0
  %183 = vmatpush1.msra.mxu0 %v120
  %184 = vmatprep.subr.mxu0 0.0
  %185 = vmatpush2.msra.mxu0 %v151
  %186 = vmatprep.subr.mxu0 0.0
  %187 = vmatpush2.msra.mxu0 %v150
  %188 = vmatprep.subr.mxu0 0.0
  %189 = vmatpush2.msra.mxu0 %v149
  %190 = vmatprep.subr.mxu0 0.0
  %191 = vmatpush2.msra.mxu0 %v148
  %192 = vmatprep.subr.mxu0 0.0
  %193 = vmatpush2.msra.mxu0 %v147
  %194 = vmatprep.subr.mxu0 0.0
  %195 = vmatpush2.msra.mxu0 %v146
  %196 = vmatprep.subr.mxu0 0.0
  %197 = vmatpush2.msra.mxu0 %v145
  %198 = vmatprep.subr.mxu0 0.0
  %199 = vmatpush2.msra.mxu0 %v144
  %200 = vmatprep.subr.mxu0 0.0
  %201 = vmatpush2.msra.mxu0 %v143
  %202 = vmatprep.subr.mxu0 0.0
  %203 = vmatpush2.msra.mxu0 %v142
  %204 = vmatprep.subr.mxu0 0.0
  %205 = vmatpush2.msra.mxu0 %v141
  %206 = vmatprep.subr.mxu0 0.0
  %207 = vmatpush2.msra.mxu0 %v140
  %208 = vmatprep.subr.mxu0 0.0
  %209 = vmatpush2.msra.mxu0 %v139
  %210 = vmatprep.subr.mxu0 0.0
  %211 = vmatpush2.msra.mxu0 %v138
  %212 = vmatprep.subr.mxu0 0.0
  %213 = vmatpush2.msra.mxu0 %v137
  %214 = vmatprep.subr.mxu0 0.0
  %215 = vmatpush2.msra.mxu0 %v136
  %216 = vmatprep.mubr.f32.mxu0 %v112
  %217 = vmatmul.mubr.f32.gmra.mxu0 %v110
  %v218 = vpop.f32.mrf.mxu0
  %v219 = vadd.f32 0.0, %v218
  %v220 = vpop.f32.mrf.mxu0
  %221 = vmatprep.mubr.f32.mxu0 %v116
  %222 = vmatmul.mubr.f32.gmra.mxu0 %v114
  %v223 = vpop.f32.mrf.mxu0
  %v224 = vadd.f32 0.0, %v223
  %v225 = vpop.f32.mrf.mxu0
  %226 = vdwg.mxu0
  %v227 = vld [vmem:[%s3] sm:$0x3]
  %v229 = vlaneseq
  %v230 = vshrl.u32 %v229, 7
  %v231 = vsub.s32 0, %v230
  %v232 = vrot.slane %v227, %v231
  %v233 = vlaneseq
  %v234 = vshrl.u32 %v233, 7
  %v235 = vsub.s32 1, %v234
  %v236 = vrot.slane %v227, %v235
  %239 = vmatprep.subr.mxu0 0.0
  %240 = vmatpush1.xpose.msra.mxu0 0.0
  %241 = vmatprep.subr.mxu0 0.0
  %242 = vmatpush1.xpose.msra.mxu0 0.0
  %243 = vmatprep.subr.mxu0 0.0
  %244 = vmatpush1.xpose.msra.mxu0 0.0
  %245 = vmatprep.subr.mxu0 0.0
  %246 = vmatpush1.xpose.msra.mxu0 0.0
  %247 = vmatprep.subr.mxu0 0.0
  %248 = vmatpush1.xpose.msra.mxu0 0.0
  %249 = vmatprep.subr.mxu0 0.0
  %250 = vmatpush1.xpose.msra.mxu0 0.0
  %251 = vmatprep.subr.mxu0 0.0
  %252 = vmatpush1.xpose.msra.mxu0 0.0
  %253 = vmatprep.subr.mxu0 0.0
  %254 = vmatpush1.xpose.msra.mxu0 0.0
  %255 = vmatprep.subr.mxu0 0.0
  %256 = vmatpush1.xpose.msra.mxu0 0.0
  %257 = vmatprep.subr.mxu0 0.0
  %258 = vmatpush1.xpose.msra.mxu0 0.0
  %259 = vmatprep.subr.mxu0 0.0
  %260 = vmatpush1.xpose.msra.mxu0 0.0
  %261 = vmatprep.subr.mxu0 0.0
  %262 = vmatpush1.xpose.msra.mxu0 0.0
  %263 = vmatprep.subr.mxu0 0.0
  %264 = vmatpush1.xpose.msra.mxu0 0.0
  %265 = vmatprep.subr.mxu0 0.0
  %266 = vmatpush1.xpose.msra.mxu0 0.0
  %267 = vmatprep.subr.mxu0 %v116
  %268 = vmatpush1.xpose.msra.mxu0 %v114
  %269 = vmatprep.subr.mxu0 %v112
  %270 = vmatpush1.xpose.msra.mxu0 %v110
  %271 = vmatprep.subr.mxu0 0.0
  %272 = vmatpush2.xpose.msra.mxu0 0.0
  %273 = vmatprep.subr.mxu0 0.0
  %274 = vmatpush2.xpose.msra.mxu0 0.0
  %275 = vmatprep.subr.mxu0 0.0
  %276 = vmatpush2.xpose.msra.mxu0 0.0
  %277 = vmatprep.subr.mxu0 0.0
  %278 = vmatpush2.xpose.msra.mxu0 0.0
  %279 = vmatprep.subr.mxu0 0.0
  %280 = vmatpush2.xpose.msra.mxu0 0.0
  %281 = vmatprep.subr.mxu0 0.0
  %282 = vmatpush2.xpose.msra.mxu0 0.0
  %283 = vmatprep.subr.mxu0 0.0
  %284 = vmatpush2.xpose.msra.mxu0 0.0
  %285 = vmatprep.subr.mxu0 0.0
  %286 = vmatpush2.xpose.msra.mxu0 0.0
  %287 = vmatprep.subr.mxu0 0.0
  %288 = vmatpush2.xpose.msra.mxu0 0.0
  %289 = vmatprep.subr.mxu0 0.0
  %290 = vmatpush2.xpose.msra.mxu0 0.0
  %291 = vmatprep.subr.mxu0 0.0
  %292 = vmatpush2.xpose.msra.mxu0 0.0
  %293 = vmatprep.subr.mxu0 0.0
  %294 = vmatpush2.xpose.msra.mxu0 0.0
  %295 = vmatprep.subr.mxu0 0.0
  %296 = vmatpush2.xpose.msra.mxu0 0.0
  %297 = vmatprep.subr.mxu0 0.0
  %298 = vmatpush2.xpose.msra.mxu0 0.0
  %299 = vmatprep.subr.mxu0 0.0
  %300 = vmatpush2.xpose.msra.mxu0 0.0
  %301 = vmatprep.subr.mxu0 0.0
  %302 = vmatpush2.xpose.msra.mxu0 0.0
  %303 = vmatprep.mubr.f32.mxu0 %v236
  %304 = vmatmul.mubr.f32.gmra.mxu0 %v232
  %v305 = vpop.f32.mrf.mxu0
  %v306 = vadd.f32 0.0, %v305
  %v307 = vpop.f32.mrf.mxu0
  %308 = vdwg.mxu0
  %310 = vset.pattern.permute.xlu0 0
  %311 = vperm.xlu0 %310, %v219
  %v312 = vpop.permute.xlu0 %311
  %315 = vset.pattern.permute.xlu0 0
  %316 = vperm.xlu0 %315, %v224
  %v317 = vpop.permute.xlu0 %316
  %v319 = vlaneseq
  %v320 = vshrl.u32 %v319, 7
  %v321 = vsub.s32 0, %v320
  %v322 = vrot.slane %v306, %v321
  %v323 = vadd.f32 %v312, %v322
  %v324 = vadd.f32 %v317, %v322
  %v325 = vmul.f32 %v323, 0.2
  %v326 = vmul.f32 %v324, 0.2
  %v327 = vmax.f32 %v323, %v325
  %v328 = vmax.f32 %v324, %v326
  %v329 = vadd.f32 %v327, %v42
  %v330 = vadd.f32 %v328, %v43
  %vm331 = vcmask 130048
  %v332 = vsel %vm331, %v329, -inf
  %333 = vmax.xlane.f32.xlu0 %v332
  %v334 = vpop.xlane.xlu0 %333
  %v335 = vsel %vm331, %v330, -inf
  %336 = vmax.xlane.f32.xlu0 %v335
  %v337 = vpop.xlane.xlu0 %336
  %v338 = vsub.f32 %v329, %v334
  %v339 = vsub.f32 %v330, %v337
  %v340 = vmul.f32 %v338, 1.442695
  %v341 = vpow.pop %v340
  %v342 = vmul.f32 %v339, 1.442695
  %v343 = vpow.pop %v342
  %v344 = vsel %vm331, %v341, 0.0
  %345 = vadd.xlane.f32.xlu0 %v344
  %v346 = vpop.xlane.xlu0 %345
  %v347 = vsel %vm331, %v343, 0.0
  %348 = vadd.xlane.f32.xlu0 %v347
  %v349 = vpop.xlane.xlu0 %348
  %v350 = vrcp.pop %v346
  %v351 = vrcp.pop %v349
  %v352 = vmul.f32 %v341, %v350
  %v353 = vmul.f32 %v343, %v351
  %v354 = vpack.c.bf16 %v353, %v352
  %v355 = vld [vmem:[%s5] sm:$0x3]
  %v357 = vlaneseq
  %v358 = vshrl.u32 %v357, 7
  %v359 = vsub.s32 0, %v358
  %v360 = vrot.slane %v355, %v359
  %v361 = vlaneseq
  %v362 = vshrl.u32 %v361, 7
  %v363 = vsub.s32 1, %v362
  %v364 = vrot.slane %v355, %v363
  %v368 = vsel %vm331, %v354, 0
  %370 = vmatprep.subr.bf16.mxu0 0
  %371 = vmatpush1.bf16.msra.mxu0 0
  %372 = vmatprep.subr.bf16.mxu0 0
  %373 = vmatpush1.bf16.msra.mxu0 0
  %374 = vmatprep.subr.bf16.mxu0 0
  %375 = vmatpush1.bf16.msra.mxu0 0
  %376 = vmatprep.subr.bf16.mxu0 0
  %377 = vmatpush1.bf16.msra.mxu0 0
  %378 = vmatprep.subr.bf16.mxu0 0
  %379 = vmatpush1.bf16.msra.mxu0 0
  %380 = vmatprep.subr.bf16.mxu0 0
  %381 = vmatpush1.bf16.msra.mxu0 0
  %382 = vmatprep.subr.bf16.mxu0 0
  %383 = vmatpush1.bf16.msra.mxu0 0
  %384 = vmatprep.subr.bf16.mxu0 %v119
  %385 = vmatpush1.bf16.msra.mxu0 %v118
  %386 = vmatprep.subr.bf16.mxu0 0
  %387 = vmatpush2.bf16.msra.mxu0 0
  %388 = vmatprep.subr.bf16.mxu0 0
  %389 = vmatpush2.bf16.msra.mxu0 0
  %390 = vmatprep.subr.bf16.mxu0 0
  %391 = vmatpush2.bf16.msra.mxu0 0
  %392 = vmatprep.subr.bf16.mxu0 0
  %393 = vmatpush2.bf16.msra.mxu0 0
  %394 = vmatprep.subr.bf16.mxu0 0
  %395 = vmatpush2.bf16.msra.mxu0 0
  %396 = vmatprep.subr.bf16.mxu0 0
  %397 = vmatpush2.bf16.msra.mxu0 0
  %398 = vmatprep.subr.bf16.mxu0 0
  %399 = vmatpush2.bf16.msra.mxu0 0
  %400 = vmatprep.subr.bf16.mxu0 0
  %401 = vmatpush2.bf16.msra.mxu0 0
  %402 = vmatprep.mubr.bf16.mxu0 0
  %403 = vmatmul.mubr.bf16.gmra.mxu0 %v368
  %v404 = vpop.f32.mrf.mxu0
  %v405 = vadd.f32 %v360, %v404
  %v406 = vpop.f32.mrf.mxu0
  %v407 = vadd.f32 %v364, %v406
  %v408 = vpop.f32.mrf.mxu0
  %v409 = vadd.f32 %v360, %v408
  %v410 = vpop.f32.mrf.mxu0
  %v411 = vadd.f32 %v364, %v410
  %412 = vdwg.mxu0
  %v413 = vtanh.pop %v405
  %v414 = vtanh.pop %v407
  %v415 = vtanh.pop %v409
  %v416 = vtanh.pop %v411
  %v417 = vpack.c.bf16 %v415, %v413
  %v418 = vpack.c.bf16 %v416, %v414
  %v419 = vld [vmem:[%s6] sm:$0xf]
  %v420 = vld [vmem:[%s6 + $0x4] sm:$0xf]
  %v421 = vld [vmem:[%s6 + $0x8] sm:$0xf]
  %v422 = vld [vmem:[%s6 + $0xc] sm:$0xf]
  %v423 = vld [vmem:[%s6 + $0x10] sm:$0xf]
  %v424 = vld [vmem:[%s6 + $0x14] sm:$0xf]
  %v425 = vld [vmem:[%s6 + $0x18] sm:$0xf]
  %v426 = vld [vmem:[%s6 + $0x1c] sm:$0xf]
  %v427 = vld [vmem:[%s6 + $0x20] sm:$0xf]
  %v428 = vld [vmem:[%s6 + $0x24] sm:$0xf]
  %v429 = vld [vmem:[%s6 + $0x28] sm:$0xf]
  %v430 = vld [vmem:[%s6 + $0x2c] sm:$0xf]
  %v431 = vld [vmem:[%s6 + $0x30] sm:$0xf]
  %v432 = vld [vmem:[%s6 + $0x34] sm:$0xf]
  %v433 = vld [vmem:[%s6 + $0x38] sm:$0xf]
  %v434 = vld [vmem:[%s6 + $0x3c] sm:$0xf]
  %v435 = vld [vmem:[%s6 + $0x40] sm:$0xf]
  %v436 = vld [vmem:[%s6 + $0x44] sm:$0xf]
  %v437 = vld [vmem:[%s6 + $0x48] sm:$0xf]
  %v438 = vld [vmem:[%s6 + $0x4c] sm:$0xf]
  %v439 = vld [vmem:[%s6 + $0x50] sm:$0xf]
  %v440 = vld [vmem:[%s6 + $0x54] sm:$0xf]
  %v441 = vld [vmem:[%s6 + $0x58] sm:$0xf]
  %v442 = vld [vmem:[%s6 + $0x5c] sm:$0xf]
  %v443 = vld [vmem:[%s6 + $0x60] sm:$0xf]
  %v444 = vld [vmem:[%s6 + $0x64] sm:$0xf]
  %v445 = vld [vmem:[%s6 + $0x68] sm:$0xf]
  %v446 = vld [vmem:[%s6 + $0x6c] sm:$0xf]
  %v447 = vld [vmem:[%s6 + $0x70] sm:$0xf]
  %v448 = vld [vmem:[%s6 + $0x74] sm:$0xf]
  %v449 = vld [vmem:[%s6 + $0x78] sm:$0xf]
  %v450 = vld [vmem:[%s6 + $0x7c] sm:$0xf]
  %v483 = vunpack.c.l.b16 %v419
  %v484 = vunpack.c.l.b16 %v420
  %v485 = vunpack.c.l.b16 %v421
  %v486 = vunpack.c.l.b16 %v422
  %v487 = vunpack.c.l.b16 %v423
  %v488 = vunpack.c.l.b16 %v424
  %v489 = vunpack.c.l.b16 %v425
  %v490 = vunpack.c.l.b16 %v426
  %v491 = vunpack.c.l.b16 %v427
  %v492 = vunpack.c.l.b16 %v428
  %v493 = vunpack.c.l.b16 %v429
  %v494 = vunpack.c.l.b16 %v430
  %v495 = vunpack.c.l.b16 %v431
  %v496 = vunpack.c.l.b16 %v432
  %v497 = vunpack.c.l.b16 %v433
  %v498 = vunpack.c.l.b16 %v434
  %v499 = vunpack.c.l.b16 %v435
  %v500 = vunpack.c.l.b16 %v436
  %v501 = vunpack.c.l.b16 %v437
  %v502 = vunpack.c.l.b16 %v438
  %v503 = vunpack.c.l.b16 %v439
  %v504 = vunpack.c.l.b16 %v440
  %v505 = vunpack.c.l.b16 %v441
  %v506 = vunpack.c.l.b16 %v442
  %v507 = vunpack.c.l.b16 %v443
  %v508 = vunpack.c.l.b16 %v444
  %v509 = vunpack.c.l.b16 %v445
  %v510 = vunpack.c.l.b16 %v446
  %v511 = vunpack.c.l.b16 %v447
  %v512 = vunpack.c.l.b16 %v448
  %v513 = vunpack.c.l.b16 %v449
  %v514 = vunpack.c.l.b16 %v450
  %v515 = vpack.c.b16 %v484, %v483
  %v516 = vpack.c.b16 %v486, %v485
  %v517 = vpack.c.b16 %v488, %v487
  %v518 = vpack.c.b16 %v490, %v489
  %v519 = vpack.c.b16 %v492, %v491
  %v520 = vpack.c.b16 %v494, %v493
  %v521 = vpack.c.b16 %v496, %v495
  %v522 = vpack.c.b16 %v498, %v497
  %v523 = vpack.c.b16 %v500, %v499
  %v524 = vpack.c.b16 %v502, %v501
  %v525 = vpack.c.b16 %v504, %v503
  %v526 = vpack.c.b16 %v506, %v505
  %v527 = vpack.c.b16 %v508, %v507
  %v528 = vpack.c.b16 %v510, %v509
  %v529 = vpack.c.b16 %v512, %v511
  %v530 = vpack.c.b16 %v514, %v513
  %547 = vmatprep.subr.bf16.mxu0 0
  %548 = vmatpush1.bf16.msra.mxu0 %v522
  %549 = vmatprep.subr.bf16.mxu0 0
  %550 = vmatpush1.bf16.msra.mxu0 %v521
  %551 = vmatprep.subr.bf16.mxu0 0
  %552 = vmatpush1.bf16.msra.mxu0 %v520
  %553 = vmatprep.subr.bf16.mxu0 0
  %554 = vmatpush1.bf16.msra.mxu0 %v519
  %555 = vmatprep.subr.bf16.mxu0 0
  %556 = vmatpush1.bf16.msra.mxu0 %v518
  %557 = vmatprep.subr.bf16.mxu0 0
  %558 = vmatpush1.bf16.msra.mxu0 %v517
  %559 = vmatprep.subr.bf16.mxu0 0
  %560 = vmatpush1.bf16.msra.mxu0 %v516
  %561 = vmatprep.subr.bf16.mxu0 0
  %562 = vmatpush1.bf16.msra.mxu0 %v515
  %563 = vmatprep.subr.bf16.mxu0 0
  %564 = vmatpush2.bf16.msra.mxu0 %v530
  %565 = vmatprep.subr.bf16.mxu0 0
  %566 = vmatpush2.bf16.msra.mxu0 %v529
  %567 = vmatprep.subr.bf16.mxu0 0
  %568 = vmatpush2.bf16.msra.mxu0 %v528
  %569 = vmatprep.subr.bf16.mxu0 0
  %570 = vmatpush2.bf16.msra.mxu0 %v527
  %571 = vmatprep.subr.bf16.mxu0 0
  %572 = vmatpush2.bf16.msra.mxu0 %v526
  %573 = vmatprep.subr.bf16.mxu0 0
  %574 = vmatpush2.bf16.msra.mxu0 %v525
  %575 = vmatprep.subr.bf16.mxu0 0
  %576 = vmatpush2.bf16.msra.mxu0 %v524
  %577 = vmatprep.subr.bf16.mxu0 0
  %578 = vmatpush2.bf16.msra.mxu0 %v523
  %579 = vmatprep.mubr.bf16.mxu0 %v418
  %580 = vmatmul.mubr.bf16.gmra.mxu0 %v417
  %v581 = vpop.f32.mrf.mxu0
  %v582 = vadd.f32 0.0, %v581
  %v583 = vpop.f32.mrf.mxu0
  %v584 = vpop.f32.mrf.mxu0
  %v585 = vadd.f32 0.0, %v584
  %v586 = vpop.f32.mrf.mxu0
  %587 = vdwg.mxu0
  %v588 = vpack.c.bf16 %v585, %v582
  %v589 = vld [vmem:[%s8] sm:$0xff]
  %v590 = vld [vmem:[%s8 + $0x8] sm:$0xff]
  %v592 = vsel %vm331, %v582, 0
  %v595 = vsel %vm331, %v585, 0
  %597 = vmatprep.subr.mxu0 0.0
  %598 = vmatpush1.msra.mxu0 0.0
  %599 = vmatprep.subr.mxu0 0.0
  %600 = vmatpush1.msra.mxu0 0.0
  %601 = vmatprep.subr.mxu0 0.0
  %602 = vmatpush1.msra.mxu0 0.0
  %603 = vmatprep.subr.mxu0 0.0
  %604 = vmatpush1.msra.mxu0 0.0
  %605 = vmatprep.subr.mxu0 0.0
  %606 = vmatpush1.msra.mxu0 0.0
  %607 = vmatprep.subr.mxu0 0.0
  %608 = vmatpush1.msra.mxu0 0.0
  %609 = vmatprep.subr.mxu0 0.0
  %610 = vmatpush1.msra.mxu0 0.0
  %611 = vmatprep.subr.mxu0 0.0
  %612 = vmatpush1.msra.mxu0 0.0
  %613 = vmatprep.subr.mxu0 0.0
  %614 = vmatpush1.msra.mxu0 0.0
  %615 = vmatprep.subr.mxu0 0.0
  %616 = vmatpush1.msra.mxu0 0.0
  %617 = vmatprep.subr.mxu0 0.0
  %618 = vmatpush1.msra.mxu0 0.0
  %619 = vmatprep.subr.mxu0 0.0
  %620 = vmatpush1.msra.mxu0 0.0
  %621 = vmatprep.subr.mxu0 0.0
  %622 = vmatpush1.msra.mxu0 0.0
  %623 = vmatprep.subr.mxu0 0.0
  %624 = vmatpush1.msra.mxu0 0.0
  %625 = vmatprep.subr.mxu0 0.0
  %626 = vmatpush1.msra.mxu0 %v590
  %627 = vmatprep.subr.mxu0 0.0
  %628 = vmatpush1.msra.mxu0 %v589
  %629 = vmatprep.subr.mxu0 0.0
  %630 = vmatpush2.msra.mxu0 0.0
  %631 = vmatprep.subr.mxu0 0.0
  %632 = vmatpush2.msra.mxu0 0.0
  %633 = vmatprep.subr.mxu0 0.0
  %634 = vmatpush2.msra.mxu0 0.0
  %635 = vmatprep.subr.mxu0 0.0
  %636 = vmatpush2.msra.mxu0 0.0
  %637 = vmatprep.subr.mxu0 0.0
  %638 = vmatpush2.msra.mxu0 0.0
  %639 = vmatprep.subr.mxu0 0.0
  %640 = vmatpush2.msra.mxu0 0.0
  %641 = vmatprep.subr.mxu0 0.0
  %642 = vmatpush2.msra.mxu0 0.0
  %643 = vmatprep.subr.mxu0 0.0
  %644 = vmatpush2.msra.mxu0 0.0
  %645 = vmatprep.subr.mxu0 0.0
  %646 = vmatpush2.msra.mxu0 0.0
  %647 = vmatprep.subr.mxu0 0.0
  %648 = vmatpush2.msra.mxu0 0.0
  %649 = vmatprep.subr.mxu0 0.0
  %650 = vmatpush2.msra.mxu0 0.0
  %651 = vmatprep.subr.mxu0 0.0
  %652 = vmatpush2.msra.mxu0 0.0
  %653 = vmatprep.subr.mxu0 0.0
  %654 = vmatpush2.msra.mxu0 0.0
  %655 = vmatprep.subr.mxu0 0.0
  %656 = vmatpush2.msra.mxu0 0.0
  %657 = vmatprep.subr.mxu0 0.0
  %658 = vmatpush2.msra.mxu0 0.0
  %659 = vmatprep.subr.mxu0 0.0
  %660 = vmatpush2.msra.mxu0 0.0
  %661 = vmatprep.mubr.f32.mxu0 0.0
  %662 = vmatmul.mubr.f32.gmra.mxu0 %v592
  %v663 = vpop.f32.mrf.mxu0
  %v664 = vadd.f32 0.0, %v663
  %v665 = vpop.f32.mrf.mxu0
  %666 = vmatprep.mubr.f32.mxu0 0.0
  %667 = vmatmul.mubr.f32.gmra.mxu0 %v595
  %v668 = vpop.f32.mrf.mxu0
  %v669 = vadd.f32 0.0, %v668
  %v670 = vpop.f32.mrf.mxu0
  %671 = vdwg.mxu0
  %v672 = vld [vmem:[%s7] sm:$0x1]
  %v674 = vsel %vm331, %v672, 0
  %676 = vmatprep.subr.mxu0 0.0
  %677 = vmatpush1.xpose.msra.mxu0 0.0
  %678 = vmatprep.subr.mxu0 0.0
  %679 = vmatpush1.xpose.msra.mxu0 0.0
  %680 = vmatprep.subr.mxu0 0.0
  %681 = vmatpush1.xpose.msra.mxu0 0.0
  %682 = vmatprep.subr.mxu0 0.0
  %683 = vmatpush1.xpose.msra.mxu0 0.0
  %684 = vmatprep.subr.mxu0 0.0
  %685 = vmatpush1.xpose.msra.mxu0 0.0
  %686 = vmatprep.subr.mxu0 0.0
  %687 = vmatpush1.xpose.msra.mxu0 0.0
  %688 = vmatprep.subr.mxu0 0.0
  %689 = vmatpush1.xpose.msra.mxu0 0.0
  %690 = vmatprep.subr.mxu0 0.0
  %691 = vmatpush1.xpose.msra.mxu0 0.0
  %692 = vmatprep.subr.mxu0 0.0
  %693 = vmatpush1.xpose.msra.mxu0 0.0
  %694 = vmatprep.subr.mxu0 0.0
  %695 = vmatpush1.xpose.msra.mxu0 0.0
  %696 = vmatprep.subr.mxu0 0.0
  %697 = vmatpush1.xpose.msra.mxu0 0.0
  %698 = vmatprep.subr.mxu0 0.0
  %699 = vmatpush1.xpose.msra.mxu0 0.0
  %700 = vmatprep.subr.mxu0 0.0
  %701 = vmatpush1.xpose.msra.mxu0 0.0
  %702 = vmatprep.subr.mxu0 0.0
  %703 = vmatpush1.xpose.msra.mxu0 0.0
  %704 = vmatprep.subr.mxu0 0.0
  %705 = vmatpush1.xpose.msra.mxu0 %v595
  %706 = vmatprep.subr.mxu0 0.0
  %707 = vmatpush1.xpose.msra.mxu0 %v592
  %708 = vmatprep.subr.mxu0 0.0
  %709 = vmatpush2.xpose.msra.mxu0 0.0
  %710 = vmatprep.subr.mxu0 0.0
  %711 = vmatpush2.xpose.msra.mxu0 0.0
  %712 = vmatprep.subr.mxu0 0.0
  %713 = vmatpush2.xpose.msra.mxu0 0.0
  %714 = vmatprep.subr.mxu0 0.0
  %715 = vmatpush2.xpose.msra.mxu0 0.0
  %716 = vmatprep.subr.mxu0 0.0
  %717 = vmatpush2.xpose.msra.mxu0 0.0
  %718 = vmatprep.subr.mxu0 0.0
  %719 = vmatpush2.xpose.msra.mxu0 0.0
  %720 = vmatprep.subr.mxu0 0.0
  %721 = vmatpush2.xpose.msra.mxu0 0.0
  %722 = vmatprep.subr.mxu0 0.0
  %723 = vmatpush2.xpose.msra.mxu0 0.0
  %724 = vmatprep.subr.mxu0 0.0
  %725 = vmatpush2.xpose.msra.mxu0 0.0
  %726 = vmatprep.subr.mxu0 0.0
  %727 = vmatpush2.xpose.msra.mxu0 0.0
  %728 = vmatprep.subr.mxu0 0.0
  %729 = vmatpush2.xpose.msra.mxu0 0.0
  %730 = vmatprep.subr.mxu0 0.0
  %731 = vmatpush2.xpose.msra.mxu0 0.0
  %732 = vmatprep.subr.mxu0 0.0
  %733 = vmatpush2.xpose.msra.mxu0 0.0
  %734 = vmatprep.subr.mxu0 0.0
  %735 = vmatpush2.xpose.msra.mxu0 0.0
  %736 = vmatprep.subr.mxu0 0.0
  %737 = vmatpush2.xpose.msra.mxu0 0.0
  %738 = vmatprep.subr.mxu0 0.0
  %739 = vmatpush2.xpose.msra.mxu0 0.0
  %740 = vmatprep.mubr.f32.mxu0 0.0
  %741 = vmatmul.mubr.f32.gmra.mxu0 %v674
  %v742 = vpop.f32.mrf.mxu0
  %v743 = vadd.f32 0.0, %v742
  %v744 = vpop.f32.mrf.mxu0
  %745 = vdwg.mxu0
  %747 = vset.pattern.permute.xlu0 0
  %748 = vperm.xlu0 %747, %v664
  %v749 = vpop.permute.xlu0 %748
  %752 = vset.pattern.permute.xlu0 0
  %753 = vperm.xlu0 %752, %v669
  %v754 = vpop.permute.xlu0 %753
  %v756 = vlaneseq
  %v757 = vshrl.u32 %v756, 7
  %v758 = vsub.s32 0, %v757
  %v759 = vrot.slane %v743, %v758
  %v760 = vadd.f32 %v749, %v759
  %v761 = vadd.f32 %v754, %v759
  %v762 = vmul.f32 %v760, 0.2
  %v763 = vmul.f32 %v761, 0.2
  %v764 = vmax.f32 %v760, %v762
  %v765 = vmax.f32 %v761, %v763
  %v766 = vadd.f32 %v764, %v42
  %v767 = vadd.f32 %v765, %v43
  %v768 = vsel %vm331, %v766, -inf
  %769 = vmax.xlane.f32.xlu0 %v768
  %v770 = vpop.xlane.xlu0 %769
  %v771 = vsel %vm331, %v767, -inf
  %772 = vmax.xlane.f32.xlu0 %v771
  %v773 = vpop.xlane.xlu0 %772
  %v774 = vsub.f32 %v766, %v770
  %v775 = vsub.f32 %v767, %v773
  %v776 = vmul.f32 %v774, 1.442695
  %v777 = vpow.pop %v776
  %v778 = vmul.f32 %v775, 1.442695
  %v779 = vpow.pop %v778
  %v780 = vsel %vm331, %v777, 0.0
  %781 = vadd.xlane.f32.xlu0 %v780
  %v782 = vpop.xlane.xlu0 %781
  %v783 = vsel %vm331, %v779, 0.0
  %784 = vadd.xlane.f32.xlu0 %v783
  %v785 = vpop.xlane.xlu0 %784
  %v786 = vrcp.pop %v782
  %v787 = vrcp.pop %v785
  %v788 = vmul.f32 %v777, %v786
  %v789 = vmul.f32 %v779, %v787
  %v790 = vpack.c.bf16 %v789, %v788
  %v791 = vld [vmem:[%s9] sm:$0x1]
  %v793 = vlaneseq
  %v794 = vshrl.u32 %v793, 7
  %v795 = vsub.s32 0, %v794
  %v796 = vrot.slane %v791, %v795
  %v799 = vsel %vm331, %v790, 0
  %801 = vmatprep.subr.bf16.mxu0 0
  %802 = vmatpush1.bf16.msra.mxu0 0
  %803 = vmatprep.subr.bf16.mxu0 0
  %804 = vmatpush1.bf16.msra.mxu0 0
  %805 = vmatprep.subr.bf16.mxu0 0
  %806 = vmatpush1.bf16.msra.mxu0 0
  %807 = vmatprep.subr.bf16.mxu0 0
  %808 = vmatpush1.bf16.msra.mxu0 0
  %809 = vmatprep.subr.bf16.mxu0 0
  %810 = vmatpush1.bf16.msra.mxu0 0
  %811 = vmatprep.subr.bf16.mxu0 0
  %812 = vmatpush1.bf16.msra.mxu0 0
  %813 = vmatprep.subr.bf16.mxu0 0
  %814 = vmatpush1.bf16.msra.mxu0 0
  %815 = vmatprep.subr.bf16.mxu0 0
  %816 = vmatpush1.bf16.msra.mxu0 %v588
  %817 = vmatprep.subr.bf16.mxu0 0
  %818 = vmatpush2.bf16.msra.mxu0 0
  %819 = vmatprep.subr.bf16.mxu0 0
  %820 = vmatpush2.bf16.msra.mxu0 0
  %821 = vmatprep.subr.bf16.mxu0 0
  %822 = vmatpush2.bf16.msra.mxu0 0
  %823 = vmatprep.subr.bf16.mxu0 0
  %824 = vmatpush2.bf16.msra.mxu0 0
  %825 = vmatprep.subr.bf16.mxu0 0
  %826 = vmatpush2.bf16.msra.mxu0 0
  %827 = vmatprep.subr.bf16.mxu0 0
  %828 = vmatpush2.bf16.msra.mxu0 0
  %829 = vmatprep.subr.bf16.mxu0 0
  %830 = vmatpush2.bf16.msra.mxu0 0
  %831 = vmatprep.subr.bf16.mxu0 0
  %832 = vmatpush2.bf16.msra.mxu0 0
  %833 = vmatprep.mubr.bf16.mxu0 0
  %834 = vmatmul.mubr.bf16.gmra.mxu0 %v799
  %v835 = vpop.f32.mrf.mxu0
  %v836 = vadd.f32 %v796, %v835
  %v837 = vpop.f32.mrf.mxu0
  %v838 = vpop.f32.mrf.mxu0
  %v839 = vadd.f32 %v796, %v838
  %v840 = vpop.f32.mrf.mxu0
  %841 = vdwg.mxu0
  %v842 = vtanh.pop %v836
  %v843 = vtanh.pop %v839
  %v844 = vpack.c.bf16 %v843, %v842
  %v845 = vld [vmem:[%s10] sm:$0xf]
  %v846 = vld [vmem:[%s10 + $0x4] sm:$0xf]
  %v847 = vld [vmem:[%s11] sm:$0x1]
  %v849 = vlaneseq
  %v850 = vshrl.u32 %v849, 7
  %v851 = vsub.s32 0, %v850
  %v852 = vrot.slane %v847, %v851
  %v856 = vunpack.c.l.b16 %v845
  %v857 = vunpack.c.l.b16 %v846
  %v858 = vpack.c.b16 %v857, %v856
  %v861 = vsel %vm331, %v844, 0
  %863 = vmatprep.subr.bf16.mxu0 0
  %864 = vmatpush1.bf16.msra.mxu0 0
  %865 = vmatprep.subr.bf16.mxu0 0
  %866 = vmatpush1.bf16.msra.mxu0 0
  %867 = vmatprep.subr.bf16.mxu0 0
  %868 = vmatpush1.bf16.msra.mxu0 0
  %869 = vmatprep.subr.bf16.mxu0 0
  %870 = vmatpush1.bf16.msra.mxu0 0
  %871 = vmatprep.subr.bf16.mxu0 0
  %872 = vmatpush1.bf16.msra.mxu0 0
  %873 = vmatprep.subr.bf16.mxu0 0
  %874 = vmatpush1.bf16.msra.mxu0 0
  %875 = vmatprep.subr.bf16.mxu0 0
  %876 = vmatpush1.bf16.msra.mxu0 0
  %877 = vmatprep.subr.bf16.mxu0 0
  %878 = vmatpush1.bf16.msra.mxu0 %v858
  %879 = vmatprep.subr.bf16.mxu0 0
  %880 = vmatpush2.bf16.msra.mxu0 0
  %881 = vmatprep.subr.bf16.mxu0 0
  %882 = vmatpush2.bf16.msra.mxu0 0
  %883 = vmatprep.subr.bf16.mxu0 0
  %884 = vmatpush2.bf16.msra.mxu0 0
  %885 = vmatprep.subr.bf16.mxu0 0
  %886 = vmatpush2.bf16.msra.mxu0 0
  %887 = vmatprep.subr.bf16.mxu0 0
  %888 = vmatpush2.bf16.msra.mxu0 0
  %889 = vmatprep.subr.bf16.mxu0 0
  %890 = vmatpush2.bf16.msra.mxu0 0
  %891 = vmatprep.subr.bf16.mxu0 0
  %892 = vmatpush2.bf16.msra.mxu0 0
  %893 = vmatprep.subr.bf16.mxu0 0
  %894 = vmatpush2.bf16.msra.mxu0 0
  %895 = vmatprep.mubr.bf16.mxu0 0
  %896 = vmatmul.mubr.bf16.gmra.mxu0 %v861
  %v897 = vpop.f32.mrf.mxu0
  %v898 = vadd.f32 %v852, %v897
  %v899 = vpop.f32.mrf.mxu0
  %v900 = vpop.f32.mrf.mxu0
  %v901 = vadd.f32 %v852, %v900
  %v902 = vpop.f32.mrf.mxu0
  %903 = vdwg.mxu0
  %904 = vmax.xlane.f32.xlu0 %v898
  %v905 = vpop.xlane.xlu0 %904
  %906 = vmax.xlane.f32.xlu0 %v901
  %v907 = vpop.xlane.xlu0 %906
  %v908 = vsub.f32 %v898, %v905
  %v909 = vsub.f32 %v901, %v907
  %v910 = vmul.f32 %v908, 1.442695
  %v911 = vpow.pop %v910
  %v912 = vmul.f32 %v909, 1.442695
  %v913 = vpow.pop %v912
  %914 = vadd.xlane.f32.xlu0 %v911
  %v915 = vpop.xlane.xlu0 %914
  %916 = vadd.xlane.f32.xlu0 %v913
  %v917 = vpop.xlane.xlu0 %916
  %v918 = vrcp.pop %v915
  %v919 = vmul.f32 %v911, %v918
  %v920 = vrcp.pop %v917
  %v921 = vmul.f32 %v913, %v920
  %922 = vst [vmem:[%s12] sm:$0xff] %v919
  %923 = vst [vmem:[%s12 + $0x8] sm:$0xff] %v921
  // Predicated region
  $region50: #{gat_network_forward.1} parent=0 // pred_check
    _
  $region51: #{gat_network_forward.1} parent=0 // pred_check_branch
    %925 = sbr.rel (0) target = $region53
  $region52: #{gat_network_forward.1} parent=0 // pred_region
    _
  $region53: #{gat_network_forward.1} parent=0 // pred_fallthru
    _
  // Predicated region
  $region54: #{gat_network_forward.1} parent=0 // pred_check
    _
  $region55: #{gat_network_forward.1} parent=0 // pred_check_branch
    %927 = sbr.rel (0) target = $region57
  $region56: #{gat_network_forward.1} parent=0 // pred_region
    _
  $region57: #{gat_network_forward.1} parent=0 // pred_fallthru
    _

</llo_original>
